<compile_context>
chip_gen: v7x
topology: tpu7x:2x2x1
jax: 0.10.0
libtpu: 0.0.40
codegen_flags: <defaults>
</compile_context>

<pallas_src>
import jax
import jax.numpy as jnp
from jax import lax
from jax.experimental import pallas as pl
from jax.experimental.pallas import tpu as pltpu


def _round_up(x, m):
    return ((x + m - 1) // m) * m


def _pick_tb(B):
    # Big tiles amortize per-grid-step overhead; cap at 512 so large batches
    # still produce >=2 grid steps (v7x shards the "parallel" batch axis over
    # its 2 TensorCores).  All choices are multiples of 16 (bf16 sublane pack).
    # TODO(synk): sweep 256/512/1024 per generation.
    if B >= 1024:
        return 512
    if B >= 256:
        return 256
    if B >= 128:
        return 128
    return _round_up(max(B, 1), 16)


# ----------------------------------------------------------------------------
# Pallas kernel: masked-mean aggregator fused into folded post_proj + regressor.
# One grid step processes TB graphs.  x tile is lane-dense [TB, N*H] bf16.
# ----------------------------------------------------------------------------
def cg_regressor_kernel(x_ref, idx_ref, wbig_ref, small_ref, o_ref):
    tb, nh = x_ref.shape
    h = wbig_ref.shape[1]
    last = idx_ref[...]                                   # [TB, 1] int32 (-1 => padded row)

    # Lane l of the packed row holds node n = l // H; keep node iff n <= last,
    # i.e. l < (last + 1) * H  (no integer divide needed).
    lane = lax.broadcasted_iota(jnp.int32, (tb, nh), 1)
    keep = lane < (last + 1) * h                          # [TB, NH] bool

    xb = x_ref[...]                                       # [TB, NH] bf16
    xm = jnp.where(keep, xb, jnp.zeros_like(xb))          # select: safe vs garbage in ragged tile

    # Aggregation-sum folded into the first post_proj matmul (MXU, bf16 x bf16,
    # f32 accumulation):  sum_n x[:, n, :] @ W12  ==  x2d_masked @ tile(W12, (N,1))
    hsum = jnp.dot(xm, wbig_ref[...],
                   preferred_element_type=jnp.float32)    # [TB, H] f32

    # Masked mean: divide-by-count commutes through the matmul (row scaling).
    count = jnp.maximum(last + 1, 1).astype(jnp.float32)  # [TB, 1] (guard empty / padded rows)
    r = pl.reciprocal(count, approx=True)                 # EUP slot, not a VALU divide

    small = small_ref[...]                                # [3, H] packed f32 params
    b12 = small[0:1, :]                                   # [1, H]
    w34r_row = small[1:2, :]                               # [1, H]  (= w34r.T)
    b_out = small[2:3, 0:1]                                # [1, 1]

    hmid = jnp.maximum(r * hsum + b12, 0.0)                # [TB, H] (post_proj ReLU)

    # Lane-dense output block: contract H on both operands -> [1, TB]
    out = lax.dot_general(
        w34r_row, hmid,
        dimension_numbers=(((1,), (1,)), ((), ())),
        preferred_element_type=jnp.float32) + b_out        # [1, TB]
    o_ref[...] = out.reshape(1, 1, tb).astype(o_ref.dtype)


# ----------------------------------------------------------------------------
# Wrapper: folds the static weight algebra, tiles the batch axis, no x padding.
# ----------------------------------------------------------------------------
def cg_regressor_pallas(batch_embedding, last_node_idx, P, *, tb=None):
    B, N, H = batch_embedding.shape
    NH = N * H
    if tb is None:
        tb = _pick_tb(B)
    num_tiles = pl.cdiv(B, tb)
    B_pad = num_tiles * tb

    # x stays unpadded in HBM (the ragged last tile is masked in-kernel);
    # ideally the producer already emits bf16 so this cast is a no-op.
    x2d = batch_embedding
    if x2d.dtype != jnp.bfloat16:
        x2d = x2d.astype(jnp.bfloat16)
    x2d = x2d.reshape(B, NH)                               # free metadata reshape

    # Only the tiny per-graph last-node index is padded (to -1 => empty mask).
    last = jnp.pad(last_node_idx.astype(jnp.int32), ((0, B_pad - B),),
                   constant_values=-1).reshape(B_pad, 1)

    # ---- one-time host fold of the static weight algebra --------------------
    # post_proj = L1, L2, ReLU, L3, L4 ; regressor rescaled by alpha_sparse.
    w12 = (P["w1t"] @ P["w2t"]).astype(jnp.float32)               # [H, H]
    b12 = (P["b1"] @ P["w2t"] + P["b2"]).astype(jnp.float32)      # [1, H]
    # Fold the node-selector S = tile(eye(H),(N,1)) into w12: S @ w12 = tile(w12,(N,1)).
    wbig = jnp.tile(w12, (N, 1)).astype(jnp.bfloat16)             # [NH, H] MXU-resident
    alpha_sparse = P["alpha"] * P["ivec"] + P["bvec"]             # [1, H+1]
    rescale_w = (alpha_sparse[:, :H] * P["reg_w"]).T              # [H, 1]
    rescale_b = alpha_sparse[:, H:] * P["reg_b"]                  # [1, 1]
    w34r = P["w3t"] @ P["w4t"] @ rescale_w                        # [H, 1]
    b_out = (P["b3"] @ P["w4t"] + P["b4"]) @ rescale_w + rescale_b  # [1, 1]
    # TODO(synk): if `activ` were not None it would apply between post_proj and
    # the regressor; then only the L1/L2 (and S) folds are legal.

    # pack small params into one [3, H] f32 input (row0=b12, row1=w34r^T,
    # row2=[b_out, 0, ...]) — stays VMEM-resident via a constant index_map.
    small = jnp.concatenate(
        [b12, w34r.T, jnp.pad(b_out, ((0, 0), (0, H - 1)))],
        axis=0).astype(jnp.float32)                               # [3, H]

    # VMEM budget from actual (double-buffered) block sizes, with 2x headroom;
    # comfortably under v7x's 64 MiB physical / 32 MiB scoped VMEM.
    x_tile_bytes = tb * NH * 2                       # bf16 batch tile
    idx_tile_bytes = tb * 128 * 4                    # (tb,1) i32, lane-padded
    out_tile_bytes = 8 * max(tb, 128) * 4            # (1,1,tb) f32, sublane-padded
    wbig_bytes = NH * 128 * 2                        # [NH,H] bf16, lane-padded
    small_bytes = 8 * 128 * 4
    vmem_bytes = 2 * (x_tile_bytes + idx_tile_bytes + out_tile_bytes) \
        + 2 * (wbig_bytes + small_bytes)
    vmem_limit = int(min(max(2 * vmem_bytes, 8 << 20), 32 << 20))

    flops = B_pad * (2 * NH * H + 2 * H + 8 * NH)
    bytes_accessed = B * NH * 2 + B_pad * 4 + NH * H * 2 + 3 * H * 4 + B_pad * 4
    cost = pl.CostEstimate(flops=flops, transcendentals=B_pad,
                           bytes_accessed=bytes_accessed)

    out = pl.pallas_call(
        cg_regressor_kernel,
        out_shape=jax.ShapeDtypeStruct((num_tiles, 1, tb), jnp.float32),
        grid_spec=pltpu.PrefetchScalarGridSpec(
            num_scalar_prefetch=0,
            grid=(num_tiles,),
            in_specs=[
                pl.BlockSpec((tb, NH), lambda i: (i, 0)),    # lane-dense x tile (bf16)
                pl.BlockSpec((tb, 1), lambda i: (i, 0)),     # last-node idx tile
                pl.BlockSpec((NH, H), lambda i: (0, 0)),     # folded S@W12 (resident)
                pl.BlockSpec((3, H), lambda i: (0, 0)),      # packed small params (resident)
            ],
            out_specs=pl.BlockSpec((1, 1, tb), lambda i: (i, 0, 0)),
        ),
        compiler_params=pltpu.CompilerParams(
            dimension_semantics=("parallel",),
            vmem_limit_bytes=vmem_limit,
        ),
        cost_estimate=cost,
    )(x2d, last, wbig, small)

    return out.reshape(num_tiles * tb, 1)[:B]


# ----------------------------------------------------------------------------
# Deterministic stand-ins for the injected submodules (plain JAX glue).
# TODO(synk): embed_layer / encoder / aggregator are constructor-injected
# modules with unspecified architecture; replaced by deterministic stand-ins
# (masked-mean aggregator is implemented inside the Pallas kernel).
# ----------------------------------------------------------------------------
def embed_layer(P, reg_inds, reg_shapes, w_inds, w_shapes, w_kernels, w_bias):
    e = P["emb_reg"][reg_inds] + reg_shapes @ P["Wshape"]
    e = e + P["emb_w"][w_inds] + w_shapes @ P["Wwshape"]
    e = e + w_kernels @ P["Wkern"] + w_bias @ P["Wbias"]
    return e  # [B, N, H]


def encoder(P, node_emb, adj, last_idx):
    msg = jnp.einsum("bij,bjh->bih", adj, node_emb)
    out = jax.nn.relu(node_emb + msg @ P["Wenc"])          # [B, N, H]
    # Emit bf16 here (where batch_embedding is produced) so the Pallas kernel's
    # big HBM stream is half-width without an extra cast pass.
    return out.astype(jnp.bfloat16)


def reference_tail(batch_embedding, last_node_idx, P):
    """Pure-JAX reference (unfolded, f32 math) for the Pallas tail."""
    B, N, H = batch_embedding.shape
    mask = (jnp.arange(N)[None, :] <= last_node_idx[:, None]).astype(jnp.float32)
    mask = mask[:, :, None]
    g = jnp.sum(batch_embedding * mask, axis=1) / jnp.sum(mask, axis=1)
    h = g @ P["w1t"] + P["b1"]
    h = h @ P["w2t"] + P["b2"]
    h = jnp.maximum(h, 0.0)
    h = h @ P["w3t"] + P["b3"]
    h = h @ P["w4t"] + P["b4"]
    alpha_sparse = P["alpha"] * P["ivec"] + P["bvec"]
    rescale_w = (alpha_sparse[:, :H] * P["reg_w"]).T
    rescale_b = alpha_sparse[:, H:] * P["reg_b"]
    return h @ rescale_w + rescale_b


if __name__ == "__main__":
    B, N, H = 2, 8, 32           # batch graphs, nodes per graph, hidden_size
    VOCAB, SHAPE_F, KERN_F, BIAS_F = 16, 4, 2, 1

    key = jax.random.PRNGKey(0)
    ks = jax.random.split(key, 24)

    def rnd(k, shape, scale=0.1):
        return (scale * jax.random.normal(k, shape)).astype(jnp.float32)

    P = {
        # stand-in embed_layer / encoder params
        "emb_reg": rnd(ks[0], (VOCAB, H)),
        "emb_w":   rnd(ks[1], (VOCAB, H)),
        "Wshape":  rnd(ks[2], (SHAPE_F, H)),
        "Wwshape": rnd(ks[3], (SHAPE_F, H)),
        "Wkern":   rnd(ks[4], (KERN_F, H)),
        "Wbias":   rnd(ks[5], (BIAS_F, H)),
        "Wenc":    rnd(ks[6], (H, H)),
        # post_proj (torch Linear weights [out,in]; stored pre-transposed [in,out])
        "w1t": rnd(ks[7],  (H, H)), "b1": rnd(ks[8],  (1, H)),
        "w2t": rnd(ks[9],  (H, H)), "b2": rnd(ks[10], (1, H)),
        "w3t": rnd(ks[11], (H, H)), "b3": rnd(ks[12], (1, H)),
        "w4t": rnd(ks[13], (H, H)), "b4": rnd(ks[14], (1, H)),
        # regressor (hidden_size -> 1)
        "reg_w": rnd(ks[15], (1, H)),
        "reg_b": rnd(ks[16], (1, 1)),
        # init_alpha() params
        "alpha": rnd(ks[17], (1, 1), scale=1.0),
        "bvec":  rnd(ks[18], (1, H + 1), scale=1.0),
        "ivec":  jnp.ones((1, H + 1), dtype=jnp.float32),
    }

    # forward-pass inputs
    regular_node_inds = jax.random.randint(ks[19], (B, N), 0, VOCAB)
    regular_node_shapes = rnd(ks[20], (B, N, SHAPE_F), scale=1.0)
    weighted_node_inds = jax.random.randint(ks[21], (B, N), 0, VOCAB)
    weighted_node_shapes = rnd(ks[22], (B, N, SHAPE_F), scale=1.0)
    weighted_node_kernels = rnd(ks[23], (B, N, KERN_F), scale=1.0)
    weighted_node_bias = jnp.ones((B, N, BIAS_F), dtype=jnp.float32)
    adj = (jax.random.uniform(jax.random.PRNGKey(1), (B, N, N)) > 0.7).astype(jnp.float32)
    batch_last_node_idx = jnp.array([N - 1, N - 3], dtype=jnp.int32)

    # glue: embed_layer -> encoder (encoder emits bf16 batch_embedding)
    node_embedding = embed_layer(
        P, regular_node_inds, regular_node_shapes,
        weighted_node_inds, weighted_node_shapes,
        weighted_node_kernels, weighted_node_bias)
    batch_embedding = encoder(P, node_embedding, adj, batch_last_node_idx)

    # Tolerances: kernel consumes bf16 x (same values fed to the f32 reference)
    # and a bf16 copy of the folded W12 plus an approx reciprocal, so expected
    # deviation is O(1e-4); these bounds are loose enough to be non-flaky while
    # still catching real bugs.
    ATOL, RTOL = 1e-3, 1e-2

    # --- test 1: module-consistent small shapes (single grid tile, ragged) ---
    out = jax.block_until_ready(
        cg_regressor_pallas(batch_embedding, batch_last_node_idx, P))
    ref = reference_tail(batch_embedding, batch_last_node_idx, P)
    assert out.shape == (B, 1)
    assert jnp.allclose(out, ref, atol=ATOL, rtol=RTOL), (out, ref)

    # --- test 2: multi-tile batch path (tb=256, grid=2, ragged last tile) ----
    B2 = 300
    kb = jax.random.split(jax.random.PRNGKey(42), 2)
    be2 = (0.3 * jax.random.normal(kb[0], (B2, N, H))).astype(jnp.bfloat16)
    idx2 = jax.random.randint(kb[1], (B2,), 0, N).astype(jnp.int32)
    out2 = jax.block_until_ready(cg_regressor_pallas(be2, idx2, P))
    ref2 = reference_tail(be2, idx2, P)
    assert out2.shape == (B2, 1)
    assert jnp.allclose(out2, ref2, atol=ATOL, rtol=RTOL), float(
        jnp.max(jnp.abs(out2 - ref2)))

    print("KERNEL_OK")
</pallas_src>

<mosaic_0001>
module attributes {stable_mosaic.version = 11 : i64} {
  func.func @cg_regressor_kernel(%arg0: i32, %arg1: memref<16x256xbf16, #tpu.memory_space<vmem>>, %arg2: memref<16x1xi32, #tpu.memory_space<vmem>>, %arg3: memref<256x32xbf16, #tpu.memory_space<vmem>>, %arg4: memref<3x32xf32, #tpu.memory_space<vmem>>, %arg5: memref<1x1x16xf32, #tpu.memory_space<vmem>>) attributes {dimension_semantics = [#tpu.dimension_semantics<parallel>], iteration_bounds = array<i64: 1>, scalar_prefetch = 0 : i64, scratch_operands = 0 : i64, tpu.core_type = #tpu.core_type<tc>, window_params = [{transform_indices = @transform_0, window_bounds = array<i64: 16, 256>}, {transform_indices = @transform_1, window_bounds = array<i64: 16, 1>}, {pipeline_mode = #tpu.pipeline_mode<synchronous>, transform_indices = @transform_2, window_bounds = array<i64: 256, 32>}, {pipeline_mode = #tpu.pipeline_mode<synchronous>, transform_indices = @transform_3, window_bounds = array<i64: 3, 32>}, {transform_indices = @transform_4, window_bounds = array<i64: 1, 1, 16>}]} {
    %c0 = arith.constant 0 : index
    %c0_0 = arith.constant 0 : index
    %0 = vector.load %arg2[%c0, %c0_0] : memref<16x1xi32, #tpu.memory_space<vmem>>, vector<16x1xi32>
    %1 = tpu.iota {dimensions = array<i32: 1>} : vector<16x256xi32>
    %c1_i32 = arith.constant 1 : i32
    %2 = vector.broadcast %c1_i32 : i32 to vector<16x1xi32>
    %3 = arith.addi %0, %2 : vector<16x1xi32>
    %c32_i32 = arith.constant 32 : i32
    %4 = vector.broadcast %c32_i32 : i32 to vector<16x1xi32>
    %5 = arith.muli %3, %4 : vector<16x1xi32>
    %6 = vector.broadcast %5 : vector<16x1xi32> to vector<16x256xi32>
    %7 = arith.cmpi slt, %1, %6 : vector<16x256xi32>
    %c0_1 = arith.constant 0 : index
    %c0_2 = arith.constant 0 : index
    %8 = vector.load %arg1[%c0_1, %c0_2] : memref<16x256xbf16, #tpu.memory_space<vmem>>, vector<16x256xbf16>
    %cst = arith.constant 0.000000e+00 : bf16
    %9 = vector.broadcast %cst : bf16 to vector<16x256xbf16>
    %10 = arith.select %7, %8, %9 : vector<16x256xi1>, vector<16x256xbf16>
    %c0_3 = arith.constant 0 : index
    %c0_4 = arith.constant 0 : index
    %11 = vector.load %arg3[%c0_3, %c0_4] : memref<256x32xbf16, #tpu.memory_space<vmem>>, vector<256x32xbf16>
    %cst_5 = arith.constant dense<0.000000e+00> : vector<16x32xf32>
    %12 = tpu.matmul %10, %11, %cst_5 {dimension_numbers = #tpu.dot_dimension_numbers<[1], [0], [0], [1], [0, 0, 1, 1], [], []>} : vector<16x256xbf16>, vector<256x32xbf16>, vector<16x32xf32> -> vector<16x32xf32>
    %c1_i32_6 = arith.constant 1 : i32
    %13 = vector.broadcast %c1_i32_6 : i32 to vector<16x1xi32>
    %14 = arith.addi %0, %13 : vector<16x1xi32>
    %c1_i32_7 = arith.constant 1 : i32
    %15 = vector.broadcast %c1_i32_7 : i32 to vector<16x1xi32>
    %16 = arith.maxsi %14, %15 : vector<16x1xi32>
    %17 = arith.sitofp %16 : vector<16x1xi32> to vector<16x1xf32>
    %18 = tpu.reciprocal %17 {approx = true} : vector<16x1xf32> -> vector<16x1xf32>
    %c0_8 = arith.constant 0 : index
    %c0_9 = arith.constant 0 : index
    %19 = vector.load %arg4[%c0_8, %c0_9] : memref<3x32xf32, #tpu.memory_space<vmem>>, vector<3x32xf32>
    %20 = vector.extract_strided_slice %19 {offsets = [0, 0], sizes = [1, 32], strides = [1, 1]} : vector<3x32xf32> to vector<1x32xf32>
    %21 = vector.extract_strided_slice %19 {offsets = [1, 0], sizes = [1, 32], strides = [1, 1]} : vector<3x32xf32> to vector<1x32xf32>
    %22 = vector.extract_strided_slice %19 {offsets = [2, 0], sizes = [1, 1], strides = [1, 1]} : vector<3x32xf32> to vector<1x1xf32>
    %23 = vector.broadcast %18 : vector<16x1xf32> to vector<16x32xf32>
    %24 = arith.mulf %23, %12 : vector<16x32xf32>
    %25 = vector.broadcast %20 : vector<1x32xf32> to vector<16x32xf32>
    %26 = arith.addf %24, %25 : vector<16x32xf32>
    %cst_10 = arith.constant 0.000000e+00 : f32
    %27 = vector.broadcast %cst_10 : f32 to vector<16x32xf32>
    %28 = arith.maximumf %26, %27 : vector<16x32xf32>
    %cst_11 = arith.constant dense<0.000000e+00> : vector<1x16xf32>
    %29 = tpu.matmul %21, %28, %cst_11 {dimension_numbers = #tpu.dot_dimension_numbers<[1], [1], [0], [0], [0, 0, 1, 0], [], []>} : vector<1x32xf32>, vector<16x32xf32>, vector<1x16xf32> -> vector<1x16xf32>
    %30 = vector.broadcast %22 : vector<1x1xf32> to vector<1x16xf32>
    %31 = arith.addf %29, %30 : vector<1x16xf32>
    %32 = vector.shape_cast %31 : vector<1x16xf32> to vector<1x1x16xf32>
    %c0_12 = arith.constant 0 : index
    %c0_13 = arith.constant 0 : index
    %c0_14 = arith.constant 0 : index
    %33 = vector.load %arg5[%c0_12, %c0_13, %c0_14] : memref<1x1x16xf32, #tpu.memory_space<vmem>>, vector<1x1x16xf32>
    tpu.vector_store %arg5[%c0_12, %c0_13, %c0_14], %32 {strides = array<i32>} : memref<1x1x16xf32, #tpu.memory_space<vmem>>, vector<1x1x16xf32>,
    return
  }
  func.func @transform_0(%arg0: i32) -> (i32, i32) {
    %c0_i32 = arith.constant 0 : i32
    %c0_i32_0 = arith.constant 0 : i32
    return %arg0, %c0_i32 : i32, i32
  }
  func.func @transform_1(%arg0: i32) -> (i32, i32) {
    %c0_i32 = arith.constant 0 : i32
    %c0_i32_0 = arith.constant 0 : i32
    return %arg0, %c0_i32 : i32, i32
  }
  func.func @transform_2(%arg0: i32) -> (i32, i32) {
    %c0_i32 = arith.constant 0 : i32
    %c0_i32_0 = arith.constant 0 : i32
    %c0_i32_1 = arith.constant 0 : i32
    return %c0_i32, %c0_i32_0 : i32, i32
  }
  func.func @transform_3(%arg0: i32) -> (i32, i32) {
    %c0_i32 = arith.constant 0 : i32
    %c0_i32_0 = arith.constant 0 : i32
    %c0_i32_1 = arith.constant 0 : i32
    return %c0_i32, %c0_i32_0 : i32, i32
  }
  func.func @transform_4(%arg0: i32) -> (i32, i32, i32) {
    %c0_i32 = arith.constant 0 : i32
    %c0_i32_0 = arith.constant 0 : i32
    %c0_i32_1 = arith.constant 0 : i32
    return %arg0, %c0_i32, %c0_i32_0 : i32, i32, i32
  }
}

</mosaic_0001>

<llo_original>
// kernel: tpu_custom_call.1
$region0: #{tpu_custom_call.1}
  #allocation0 [shape = 'u32[]', space=smem, size = 0x4, offset = 0x4, fixed_abs, tag = 'smem constant byte address 0x4 - core index']
  #allocation1 [shape = 'u32[144,128]{1,0:T(1,128)}', space=vmem, size = 0x12000, scoped, tag = 'internal scratch']
  %s0 = inlined_call_operand.vmem [shape: bf16[2,256], index: 0, kind: input, shape index: {}]
  %s1 = inlined_call_operand.vmem [shape: s32[16,1], index: 1, kind: input, shape index: {}]
  %s2 = inlined_call_operand.vmem [shape: bf16[256,32], index: 2, kind: input, shape index: {}]
  %s3 = inlined_call_operand.vmem [shape: f32[3,32], index: 3, kind: input, shape index: {}]
  %s4 = inlined_call_operand.hbm [shape: f32[1,1,16], index: 4, kind: output, shape index: {}]
  %s5 = sld [smem:[#allocation0]]
  $region26: #{tpu_custom_call.1} parent=0
    _
  %s7 = ssub.s32 1, %s5
  %s8 = scalar_select 0, %s7, %s5
  $region1: #{tpu_custom_call.1} parent=0
    #allocation2 [shape = 'u8[512]{0}', space=vmem, size = 0x400, scoped, tag = 'output window, operand 0, single buffered']
    #allocation3 [shape = 's32[1]{0}', space=sflag, size = 0x4, scoped, tag = 'scoped memory for tpu_custom_call.1']
    %9 = vsyncpa [#allocation3], 0
    // Predicated region
    $region2: #{tpu_custom_call.1} parent=1 // pred_check
      _
    $region3: #{tpu_custom_call.1} parent=1 // pred_check_branch
      %11 = sbr.rel (0) target = $region5
    $region4: #{tpu_custom_call.1} parent=1 // pred_region
      _
    $region5: #{tpu_custom_call.1} parent=1 // pred_fallthru
      _
    // Predicated region
    $region6: #{tpu_custom_call.1} parent=1 // pred_check
      _
    $region7: #{tpu_custom_call.1} parent=1 // pred_check_branch
      %13 = sbr.rel (0) target = $region9
    $region8: #{tpu_custom_call.1} parent=1 // pred_region
      _
    $region9: #{tpu_custom_call.1} parent=1 // pred_fallthru
      _
    // Predicated region
    $region10: #{tpu_custom_call.1} parent=1 // pred_check
      _
    $region11: #{tpu_custom_call.1} parent=1 // pred_check_branch
      %15 = sbr.rel (0) target = $region13
    $region12: #{tpu_custom_call.1} parent=1 // pred_region
      _
    $region13: #{tpu_custom_call.1} parent=1 // pred_fallthru
      _
    // Predicated region
    $region14: #{tpu_custom_call.1} parent=1 // pred_check
      _
    $region15: #{tpu_custom_call.1} parent=1 // pred_check_branch
      %17 = sbr.rel (0) target = $region17
    $region16: #{tpu_custom_call.1} parent=1 // pred_region
      _
    $region17: #{tpu_custom_call.1} parent=1 // pred_fallthru
      _
    %v20 = vld [vmem:[%s1] sm:$0xff]
    %v21 = vld [vmem:[%s1 + $0x8] sm:$0xff]
    %v22 = vlaneseq
    %v23 = vand.u32 %v22, 127
    %v24 = vadd.s32 %v23, 128
    %v25 = vadd.s32 %v20, 1
    %v26 = vadd.s32 %v21, 1
    %v27 = vmul.u32 %v25, 32
    %v28 = vmul.u32 %v26, 32
    %29 = vset.pattern.permute.xlu0 0
    %30 = vperm.xlu0 %29, %v27
    %v31 = vpop.permute.xlu0 %30
    %32 = vset.pattern.permute.xlu0 0
    %33 = vperm.xlu0 %32, %v28
    %v34 = vpop.permute.xlu0 %33
    %vm35 = vcmp.lt.s32.totalorder %v23, %v31
    %vm36 = vcmp.lt.s32.totalorder %v24, %v31
    %vm37 = vcmp.lt.s32.totalorder %v23, %v34
    %vm38 = vcmp.lt.s32.totalorder %v24, %v34
    %v39 = vld [vmem:[%s0] sm:$0x3]
    %v40 = vld [vmem:[%s0 + $0x2] sm:$0x3]
    %v41 = vld [vmem:[%s0 + $0x4] sm:$0x3]
    %v42 = vld [vmem:[%s0 + $0x6] sm:$0x3]
    %v43 = vld [vmem:[%s0 + $0x8] sm:$0x3]
    %v44 = vld [vmem:[%s0 + $0xa] sm:$0x3]
    %v45 = vld [vmem:[%s0 + $0xc] sm:$0x3]
    %v46 = vld [vmem:[%s0 + $0xe] sm:$0x3]
    %v47 = vsel %vm35, 1, 0
    %v48 = vsel %vm36, 1, 0
    %v49 = vsel %vm37, 1, 0
    %v50 = vsel %vm38, 1, 0
    %v51 = vcombine.low %v47, %v48
    %v52 = vcombine.high %v47, %v48
    %v54 = vunpack.c.l.s4 1983009808
    %v55 = vunpack.c.0.s8 %v54
    %v56 = vlaneseq
    %v57 = vshrl.u32 %v56, 7
    %v58 = vsub.s32 %v55, %v57
    %v59 = vrot.slane %v51, %v58
    %v61 = vunpack.c.l.s4 1983009808
    %v62 = vunpack.c.0.s8 %v61
    %v63 = vlaneseq
    %v64 = vshrl.u32 %v63, 7
    %v65 = vsub.s32 %v62, %v64
    %v66 = vrot.slane %v52, %v65
    %v67 = vcombine.high %v59, %v59
    %v68 = vcombine.high %v66, %v66
    %v69 = vcombine.low %v49, %v50
    %v70 = vcombine.high %v49, %v50
    %v72 = vunpack.c.l.s4 1983009808
    %v73 = vunpack.c.0.s8 %v72
    %v74 = vlaneseq
    %v75 = vshrl.u32 %v74, 7
    %v76 = vsub.s32 %v73, %v75
    %v77 = vrot.slane %v69, %v76
    %v79 = vunpack.c.l.s4 1983009808
    %v80 = vunpack.c.0.s8 %v79
    %v81 = vlaneseq
    %v82 = vshrl.u32 %v81, 7
    %v83 = vsub.s32 %v80, %v82
    %v84 = vrot.slane %v70, %v83
    %v85 = vcombine.high %v77, %v77
    %v86 = vcombine.high %v84, %v84
    %vm87 = vcmp.ne.s32.totalorder %v59, 0
    %vm88 = vcmp.ne.s32.totalorder %v67, 0
    %vm89 = vcmp.ne.s32.totalorder %v66, 0
    %vm90 = vcmp.ne.s32.totalorder %v68, 0
    %vm91 = vcmp.ne.s32.totalorder %v77, 0
    %vm92 = vcmp.ne.s32.totalorder %v85, 0
    %vm93 = vcmp.ne.s32.totalorder %v84, 0
    %vm94 = vcmp.ne.s32.totalorder %v86, 0
    %v95 = vsel %vm87, 1, 0
    %v96 = vsel %vm88, 1, 0
    %v97 = vsel %vm89, 1, 0
    %v98 = vsel %vm90, 1, 0
    %v99 = vsel %vm91, 1, 0
    %v100 = vsel %vm92, 1, 0
    %v101 = vsel %vm93, 1, 0
    %v102 = vsel %vm94, 1, 0
    %v103 = vpack.c.b16 %v95, %v95
    %v104 = vpack.c.b16 %v96, %v96
    %v105 = vpack.c.b16 %v97, %v97
    %v106 = vpack.c.b16 %v98, %v98
    %v107 = vpack.c.b16 %v99, %v99
    %v108 = vpack.c.b16 %v100, %v100
    %v109 = vpack.c.b16 %v101, %v101
    %v110 = vpack.c.b16 %v102, %v102
    %vm111 = vcmp.ne.s16.totalorder %v103, 0
    %vm112 = vcmp.ne.s16.totalorder %v104, 0
    %vm113 = vcmp.ne.s16.totalorder %v105, 0
    %vm114 = vcmp.ne.s16.totalorder %v106, 0
    %vm115 = vcmp.ne.s16.totalorder %v107, 0
    %vm116 = vcmp.ne.s16.totalorder %v108, 0
    %vm117 = vcmp.ne.s16.totalorder %v109, 0
    %vm118 = vcmp.ne.s16.totalorder %v110, 0
    %v119 = vsel %vm111, %v39, 0
    %v120 = vsel %vm112, %v40, 0
    %v121 = vsel %vm113, %v41, 0
    %v122 = vsel %vm114, %v42, 0
    %v123 = vsel %vm115, %v43, 0
    %v124 = vsel %vm116, %v44, 0
    %v125 = vsel %vm117, %v45, 0
    %v126 = vsel %vm118, %v46, 0
    %v127 = vld [vmem:[%s2] sm:$0xf]
    %v128 = vld [vmem:[%s2 + $0x4] sm:$0xf]
    %v129 = vld [vmem:[%s2 + $0x8] sm:$0xf]
    %v130 = vld [vmem:[%s2 + $0xc] sm:$0xf]
    %v131 = vld [vmem:[%s2 + $0x10] sm:$0xf]
    %v132 = vld [vmem:[%s2 + $0x14] sm:$0xf]
    %v133 = vld [vmem:[%s2 + $0x18] sm:$0xf]
    %v134 = vld [vmem:[%s2 + $0x1c] sm:$0xf]
    %v135 = vld [vmem:[%s2 + $0x20] sm:$0xf]
    %v136 = vld [vmem:[%s2 + $0x24] sm:$0xf]
    %v137 = vld [vmem:[%s2 + $0x28] sm:$0xf]
    %v138 = vld [vmem:[%s2 + $0x2c] sm:$0xf]
    %v139 = vld [vmem:[%s2 + $0x30] sm:$0xf]
    %v140 = vld [vmem:[%s2 + $0x34] sm:$0xf]
    %v141 = vld [vmem:[%s2 + $0x38] sm:$0xf]
    %v142 = vld [vmem:[%s2 + $0x3c] sm:$0xf]
    %v143 = vld [vmem:[%s2 + $0x40] sm:$0xf]
    %v144 = vld [vmem:[%s2 + $0x44] sm:$0xf]
    %v145 = vld [vmem:[%s2 + $0x48] sm:$0xf]
    %v146 = vld [vmem:[%s2 + $0x4c] sm:$0xf]
    %v147 = vld [vmem:[%s2 + $0x50] sm:$0xf]
    %v148 = vld [vmem:[%s2 + $0x54] sm:$0xf]
    %v149 = vld [vmem:[%s2 + $0x58] sm:$0xf]
    %v150 = vld [vmem:[%s2 + $0x5c] sm:$0xf]
    %v151 = vld [vmem:[%s2 + $0x60] sm:$0xf]
    %v152 = vld [vmem:[%s2 + $0x64] sm:$0xf]
    %v153 = vld [vmem:[%s2 + $0x68] sm:$0xf]
    %v154 = vld [vmem:[%s2 + $0x6c] sm:$0xf]
    %v155 = vld [vmem:[%s2 + $0x70] sm:$0xf]
    %v156 = vld [vmem:[%s2 + $0x74] sm:$0xf]
    %v157 = vld [vmem:[%s2 + $0x78] sm:$0xf]
    %v158 = vld [vmem:[%s2 + $0x7c] sm:$0xf]
    %v167 = vcombine.low %v119, %v120
    %v168 = vcombine.low %v121, %v122
    %v169 = vcombine.low %v123, %v124
    %v170 = vcombine.low %v125, %v126
    %v172 = vunpack.c.l.s4 1966171168
    %v173 = vunpack.c.0.s8 %v172
    %v174 = vlaneseq
    %v175 = vshrl.u32 %v174, 7
    %v176 = vsub.s32 %v173, %v175
    %v177 = vrot.slane %v167, %v176
    %v179 = vunpack.c.l.s4 1966171168
    %v180 = vunpack.c.0.s8 %v179
    %v181 = vlaneseq
    %v182 = vshrl.u32 %v181, 7
    %v183 = vsub.s32 %v180, %v182
    %v184 = vrot.slane %v168, %v183
    %v186 = vunpack.c.l.s4 1966171168
    %v187 = vunpack.c.0.s8 %v186
    %v188 = vlaneseq
    %v189 = vshrl.u32 %v188, 7
    %v190 = vsub.s32 %v187, %v189
    %v191 = vrot.slane %v169, %v190
    %v193 = vunpack.c.l.s4 1966171168
    %v194 = vunpack.c.0.s8 %v193
    %v195 = vlaneseq
    %v196 = vshrl.u32 %v195, 7
    %v197 = vsub.s32 %v194, %v196
    %v198 = vrot.slane %v170, %v197
    %v199 = vcombine.low %v177, %v184
    %v200 = vcombine.high %v177, %v184
    %v201 = vcombine.low %v191, %v198
    %v202 = vcombine.high %v191, %v198
    %v204 = vunpack.c.l.s4 1966171168
    %v205 = vunpack.c.0.s8 %v204
    %v206 = vlaneseq
    %v207 = vshrl.u32 %v206, 7
    %v208 = vsub.s32 %v205, %v207
    %v209 = vrot.slane %v199, %v208
    %v211 = vunpack.c.l.s4 1966171168
    %v212 = vunpack.c.0.s8 %v211
    %v213 = vlaneseq
    %v214 = vshrl.u32 %v213, 7
    %v215 = vsub.s32 %v212, %v214
    %v216 = vrot.slane %v200, %v215
    %v218 = vunpack.c.l.s4 1966171168
    %v219 = vunpack.c.0.s8 %v218
    %v220 = vlaneseq
    %v221 = vshrl.u32 %v220, 7
    %v222 = vsub.s32 %v219, %v221
    %v223 = vrot.slane %v201, %v222
    %v225 = vunpack.c.l.s4 1966171168
    %v226 = vunpack.c.0.s8 %v225
    %v227 = vlaneseq
    %v228 = vshrl.u32 %v227, 7
    %v229 = vsub.s32 %v226, %v228
    %v230 = vrot.slane %v202, %v229
    %v231 = vcombine.low %v209, %v223
    %v232 = vcombine.low %v216, %v230
    %v267 = vunpack.c.l.b16 %v127
    %v268 = vunpack.c.l.b16 %v128
    %v269 = vunpack.c.l.b16 %v129
    %v270 = vunpack.c.l.b16 %v130
    %v271 = vunpack.c.l.b16 %v131
    %v272 = vunpack.c.l.b16 %v132
    %v273 = vunpack.c.l.b16 %v133
    %v274 = vunpack.c.l.b16 %v134
    %v275 = vunpack.c.l.b16 %v135
    %v276 = vunpack.c.l.b16 %v136
    %v277 = vunpack.c.l.b16 %v137
    %v278 = vunpack.c.l.b16 %v138
    %v279 = vunpack.c.l.b16 %v139
    %v280 = vunpack.c.l.b16 %v140
    %v281 = vunpack.c.l.b16 %v141
    %v282 = vunpack.c.l.b16 %v142
    %v283 = vunpack.c.l.b16 %v143
    %v284 = vunpack.c.l.b16 %v144
    %v285 = vunpack.c.l.b16 %v145
    %v286 = vunpack.c.l.b16 %v146
    %v287 = vunpack.c.l.b16 %v147
    %v288 = vunpack.c.l.b16 %v148
    %v289 = vunpack.c.l.b16 %v149
    %v290 = vunpack.c.l.b16 %v150
    %v291 = vunpack.c.l.b16 %v151
    %v292 = vunpack.c.l.b16 %v152
    %v293 = vunpack.c.l.b16 %v153
    %v294 = vunpack.c.l.b16 %v154
    %v295 = vunpack.c.l.b16 %v155
    %v296 = vunpack.c.l.b16 %v156
    %v297 = vunpack.c.l.b16 %v157
    %v298 = vunpack.c.l.b16 %v158
    %v299 = vpack.c.b16 %v268, %v267
    %v300 = vpack.c.b16 %v270, %v269
    %v301 = vpack.c.b16 %v272, %v271
    %v302 = vpack.c.b16 %v274, %v273
    %v303 = vpack.c.b16 %v276, %v275
    %v304 = vpack.c.b16 %v278, %v277
    %v305 = vpack.c.b16 %v280, %v279
    %v306 = vpack.c.b16 %v282, %v281
    %v307 = vpack.c.b16 %v284, %v283
    %v308 = vpack.c.b16 %v286, %v285
    %v309 = vpack.c.b16 %v288, %v287
    %v310 = vpack.c.b16 %v290, %v289
    %v311 = vpack.c.b16 %v292, %v291
    %v312 = vpack.c.b16 %v294, %v293
    %v313 = vpack.c.b16 %v296, %v295
    %v314 = vpack.c.b16 %v298, %v297
    %331 = vmatprep.subr.bf16.mxu0 0
    %332 = vmatpush1.bf16.msra.mxu0 %v299
    %333 = vmatprep.subr.bf16.mxu0 0
    %334 = vmatpush1.bf16.msra.mxu0 %v300
    %335 = vmatprep.subr.bf16.mxu0 0
    %336 = vmatpush1.bf16.msra.mxu0 %v301
    %337 = vmatprep.subr.bf16.mxu0 0
    %338 = vmatpush1.bf16.msra.mxu0 %v302
    %339 = vmatprep.subr.bf16.mxu0 0
    %340 = vmatpush1.bf16.msra.mxu0 %v303
    %341 = vmatprep.subr.bf16.mxu0 0
    %342 = vmatpush1.bf16.msra.mxu0 %v304
    %343 = vmatprep.subr.bf16.mxu0 0
    %344 = vmatpush1.bf16.msra.mxu0 %v305
    %345 = vmatprep.subr.bf16.mxu0 0
    %346 = vmatpush1.bf16.msra.mxu0 %v306
    %347 = vmatprep.subr.bf16.mxu0 0
    %348 = vmatpush1.bf16.msra.mxu0 %v307
    %349 = vmatprep.subr.bf16.mxu0 0
    %350 = vmatpush1.bf16.msra.mxu0 %v308
    %351 = vmatprep.subr.bf16.mxu0 0
    %352 = vmatpush1.bf16.msra.mxu0 %v309
    %353 = vmatprep.subr.bf16.mxu0 0
    %354 = vmatpush1.bf16.msra.mxu0 %v310
    %355 = vmatprep.subr.bf16.mxu0 0
    %356 = vmatpush1.bf16.msra.mxu0 %v311
    %357 = vmatprep.subr.bf16.mxu0 0
    %358 = vmatpush1.bf16.msra.mxu0 %v312
    %359 = vmatprep.subr.bf16.mxu0 0
    %360 = vmatpush1.bf16.msra.mxu0 %v313
    %361 = vmatprep.subr.bf16.mxu0 0
    %362 = vmatpush1.bf16.msra.mxu0 %v314
    %363 = vmatprep.mubr.bf16.mxu0 %v232
    %364 = vmatmul.mubr.bf16.gmra.mrb[0].mxu0 %v231
    %v365 = vpop.f32.mrb[0].mxu0
    %v366 = vadd.f32 0.0, %v365
    %v367 = vpop.f32.mrb[0].mxu0
    %v368 = vpop.f32.mrb[0].mxu0
    %v369 = vadd.f32 0.0, %v368
    %v370 = vpop.f32.mrb[0].mxu0
    %371 = vdwg.mxu0
    %vm372 = vcmp.gt.s32.totalorder %v25, 1
    %v373 = vsel %vm372, %v25, 1
    %vm374 = vcmp.gt.s32.totalorder %v26, 1
    %v375 = vsel %vm374, %v26, 1
    %v376 = vcvt.s32.f32 %v373
    %v377 = vcvt.s32.f32 %v375
    %v378 = vrcp.pop %v376
    %v379 = vrcp.pop %v377
    %v380 = vld [vmem:[%s3] sm:$0x7]
    %382 = vset.pattern.permute.xlu0 0
    %383 = vperm.xlu0 %382, %v378
    %v384 = vpop.permute.xlu0 %383
    %387 = vset.pattern.permute.xlu0 0
    %388 = vperm.xlu0 %387, %v379
    %v389 = vpop.permute.xlu0 %388
    %v391 = vmul.f32 %v384, %v366
    %v392 = vmul.f32 %v389, %v369
    %v393 = vlaneseq
    %v394 = vshrl.u32 %v393, 7
    %v395 = vsub.s32 0, %v394
    %v396 = vrot.slane %v380, %v395
    %v397 = vadd.f32 %v391, %v396
    %v398 = vadd.f32 %v392, %v396
    %v399 = vmax.f32 %v397, 0.0
    %v400 = vmax.f32 %v398, 0.0
    %402 = vset.pattern.permute.xlu0 0
    %403 = vperm.xlu0 %402, %v380
    %v404 = vpop.permute.xlu0 %403
    %v405 = vrot.slane %v380, 1
    %v406 = vrot.slane %v404, 2
    %vm408 = vcmask 261120
    %v409 = vsel %vm408, %v405, 0
    %v412 = vsel %vm408, %v399, 0
    %v415 = vsel %vm408, %v400, 0
    %417 = vmatprep.subr.mxu0 0.0
    %418 = vmatpush1.xpose.msra.mxu0 %v412
    %419 = vmatprep.subr.mxu0 0.0
    %420 = vmatpush1.xpose.msra.mxu0 %v415
    %421 = vmatprep.subr.mxu0 0.0
    %422 = vmatpush1.xpose.msra.mxu0 0.0
    %423 = vmatprep.subr.mxu0 0.0
    %424 = vmatpush1.xpose.msra.mxu0 0.0
    %425 = vmatprep.subr.mxu0 0.0
    %426 = vmatpush1.xpose.msra.mxu0 0.0
    %427 = vmatprep.subr.mxu0 0.0
    %428 = vmatpush1.xpose.msra.mxu0 0.0
    %429 = vmatprep.subr.mxu0 0.0
    %430 = vmatpush1.xpose.msra.mxu0 0.0
    %431 = vmatprep.subr.mxu0 0.0
    %432 = vmatpush1.xpose.msra.mxu0 0.0
    %433 = vmatprep.subr.mxu0 0.0
    %434 = vmatpush1.xpose.msra.mxu0 0.0
    %435 = vmatprep.subr.mxu0 0.0
    %436 = vmatpush1.xpose.msra.mxu0 0.0
    %437 = vmatprep.subr.mxu0 0.0
    %438 = vmatpush1.xpose.msra.mxu0 0.0
    %439 = vmatprep.subr.mxu0 0.0
    %440 = vmatpush1.xpose.msra.mxu0 0.0
    %441 = vmatprep.subr.mxu0 0.0
    %442 = vmatpush1.xpose.msra.mxu0 0.0
    %443 = vmatprep.subr.mxu0 0.0
    %444 = vmatpush1.xpose.msra.mxu0 0.0
    %445 = vmatprep.subr.mxu0 0.0
    %446 = vmatpush1.xpose.msra.mxu0 0.0
    %447 = vmatprep.subr.mxu0 0.0
    %448 = vmatpush1.xpose.msra.mxu0 0.0
    %449 = vmatprep.subr.mxu0 0.0
    %450 = vmatpush1.xpose.msra.mxu0 0.0
    %451 = vmatprep.subr.mxu0 0.0
    %452 = vmatpush1.xpose.msra.mxu0 0.0
    %453 = vmatprep.subr.mxu0 0.0
    %454 = vmatpush1.xpose.msra.mxu0 0.0
    %455 = vmatprep.subr.mxu0 0.0
    %456 = vmatpush1.xpose.msra.mxu0 0.0
    %457 = vmatprep.subr.mxu0 0.0
    %458 = vmatpush1.xpose.msra.mxu0 0.0
    %459 = vmatprep.subr.mxu0 0.0
    %460 = vmatpush1.xpose.msra.mxu0 0.0
    %461 = vmatprep.subr.mxu0 0.0
    %462 = vmatpush1.xpose.msra.mxu0 0.0
    %463 = vmatprep.subr.mxu0 0.0
    %464 = vmatpush1.xpose.msra.mxu0 0.0
    %465 = vmatprep.subr.mxu0 0.0
    %466 = vmatpush1.xpose.msra.mxu0 0.0
    %467 = vmatprep.subr.mxu0 0.0
    %468 = vmatpush1.xpose.msra.mxu0 0.0
    %469 = vmatprep.subr.mxu0 0.0
    %470 = vmatpush1.xpose.msra.mxu0 0.0
    %471 = vmatprep.subr.mxu0 0.0
    %472 = vmatpush1.xpose.msra.mxu0 0.0
    %473 = vmatprep.subr.mxu0 0.0
    %474 = vmatpush1.xpose.msra.mxu0 0.0
    %475 = vmatprep.subr.mxu0 0.0
    %476 = vmatpush1.xpose.msra.mxu0 0.0
    %477 = vmatprep.subr.mxu0 0.0
    %478 = vmatpush1.xpose.msra.mxu0 0.0
    %479 = vmatprep.subr.mxu0 0.0
    %480 = vmatpush1.xpose.msra.mxu0 0.0
    %481 = vmatprep.mubr.f32.mxu0 0.0
    %482 = vmatmul.mubr.f32.gmra.mrb[0].mxu0 %v409
    %v483 = vpop.f32.mrb[0].mxu0
    %v484 = vadd.f32 %v406, %v483
    %v485 = vpop.f32.mrb[0].mxu0
    %486 = vdwg.mxu0
    %vm487 = vcmask 122880
    %488 = vst.msk [vmem:[#allocation2] sm:$0x1] %vm487, %v484
    // Predicated region
    $region18: #{tpu_custom_call.1} parent=1 // pred_check
      _
    $region19: #{tpu_custom_call.1} parent=1 // pred_check_branch
      %490 = sbr.rel (0) target = $region21
    $region20: #{tpu_custom_call.1} parent=1 // pred_region
      %s492 = ssub.s32 16, 16
      %493 = vsyncadd [#allocation3], %s492
      %s495 = sshll.u32 [#allocation2], 4
      %s496 = int_to_ptr.vmem [resolvable:$true] %s495
      %498 = dma.vmem_to_hbm [thread:$0]  %s496, 16, %s4, [#allocation3]
    $region21: #{tpu_custom_call.1} parent=1 // pred_fallthru
      _
    // Predicated region
    $region22: #{tpu_custom_call.1} parent=1 // pred_check
      _
    $region23: #{tpu_custom_call.1} parent=1 // pred_check_branch
      %500 = sbr.rel (0) target = $region25
    $region24: #{tpu_custom_call.1} parent=1 // pred_region
      %501 = dma.done [#allocation3], 16
    $region25: #{tpu_custom_call.1} parent=1 // pred_fallthru
      _
    %502 = vsyncpa [#allocation3], 1

</llo_original>
